<compile_context>
chip_gen: v6e
topology: v6e:2x2x1
jax: 0.10.0
libtpu: 0.0.40
codegen_flags: <defaults>
</compile_context>

<pallas_src>
import functools

import jax
import jax.numpy as jnp
from jax.experimental import pallas as pl
from jax.experimental.pallas import tpu as pltpu


# -----------------------------------------------------------------------------
# Tiling / budget helpers
# -----------------------------------------------------------------------------
def _tpu_budgets():
    """(max tile lanes, scoped-VMEM budget) per TPU generation."""
    try:
        vmem = int(pltpu.get_tpu_info().vmem_capacity_bytes)
    except Exception:                       # unknown chip / interpret: be safe
        vmem = 64 * 1024 * 1024
    if vmem >= 100 * 1024 * 1024:           # v5e / v6e: 128 MiB physical VMEM
        return 65536, 64 * 1024 * 1024
    return 32768, 48 * 1024 * 1024          # v7x: 64 MiB physical VMEM


def _plan_tiles(hw, max_lanes):
    """Lane-aligned tiling: pad HW only to the next multiple of 128; tile is the
    largest 128-multiple divisor of the padded extent that fits the cap, so no
    host pad/slice passes beyond lane alignment are ever needed."""
    hw128 = -(-hw // 128) * 128
    n_chunks = hw128 // 128
    cap = max(1, max_lanes // 128)
    best = 1
    d = min(cap, n_chunks)
    while d >= 1:
        if n_chunks % d == 0:
            best = d
            break
        d -= 1
    return best * 128, hw128


# -----------------------------------------------------------------------------
# Kernels
# -----------------------------------------------------------------------------
def _teacher_kernel(im1_ref, im2_ref, w1_ref, w2_ref, b_ref, t_ref):
    """im1/im2: (1, C, T) raw 0..255 (bf16/uint8); w1/w2: (K, C) bf16 already
    scaled by 1/255; b: (K, 1) f32.  Output: bf16 sigmoid targets (1, K, T).
    MXU dot in bf16 with f32 accumulation; sigmoid in f32; cast on store."""
    x1 = im1_ref[0].astype(jnp.bfloat16)                       # (C, T)
    x2 = im2_ref[0].astype(jnp.bfloat16)                       # (C, T)
    logits = (
        jnp.dot(w1_ref[...], x1, preferred_element_type=jnp.float32)
        + jnp.dot(w2_ref[...], x2, preferred_element_type=jnp.float32)
        + b_ref[...]                                           # (K, 1) broadcast
    )                                                          # (K, T) f32
    t_ref[...] = jax.nn.sigmoid(logits).astype(t_ref.dtype)[None]


def _iou_sums_kernel(t_ref, g_ref, inter_ref, union_ref, inter_acc, union_acc,
                     *, hw, tiles_per_split):
    """targets (1, K, T) bf16 vs gt one-hot (1, NSEG, T) int8 (broadcast to Kb
    inside the kernel).  Lane-parallel partial sums accumulated in (Kb, 128) f32
    scratch; outputs are per-split (1, Kb, 128) slabs that the host collapses
    (keeps the full cross-lane reduce off the kernel).  Pad lanes >= hw are
    masked here so no host-side zeroing pass is needed."""
    c = pl.program_id(0)
    i = pl.program_id(1)

    @pl.when(i == 0)
    def _():
        inter_acc[...] = jnp.zeros_like(inter_acc)
        union_acc[...] = jnp.zeros_like(union_acc)

    tile = t_ref.shape[-1]
    n_chunks = tile // 128
    base = (c * tiles_per_split + i) * tile
    lane = jax.lax.broadcasted_iota(jnp.int32, (1, 128), 1)

    def body(j, carry):
        ia, ua = carry
        off = pl.multiple_of(j * 128, 128)
        t = t_ref[0, :, pl.ds(off, 128)].astype(jnp.float32)   # (K, 128)
        g = g_ref[0, :, pl.ds(off, 128)].astype(jnp.float32)   # (NSEG, 128)
        valid = (base + off + lane) < hw                        # (1, 128)
        # mirrors: (targets * gt > 0).sum((2,3)) and (targets + gt > 0).sum((2,3))
        ia = ia + ((t * g > 0) & valid).astype(jnp.float32)
        ua = ua + ((t + g > 0) & valid).astype(jnp.float32)
        return ia, ua

    ia, ua = jax.lax.fori_loop(0, n_chunks, body,
                               (inter_acc[...], union_acc[...]),
                               unroll=min(8, n_chunks))
    inter_acc[...] = ia
    union_acc[...] = ua

    @pl.when(i == pl.num_programs(1) - 1)
    def _():
        inter_ref[...] = inter_acc[...][None]
        union_ref[...] = union_acc[...][None]


# -----------------------------------------------------------------------------
# Module
# -----------------------------------------------------------------------------
class EvalBBNetPallas:
    """JAX/Pallas port of EvalBBNet.forward (type ~ 'bbnet_iter_binary')."""

    def __init__(self, pos_threshold, neg_threshold, num_targets=8,
                 num_channels=3, seed=0):
        # Thresholds kept for signature parity; the reference computes
        # ptargets/ntargets from them but never uses them (dead work -> skipped).
        self.pos_threshold = float(pos_threshold)
        self.neg_threshold = float(neg_threshold)
        self.num_targets = int(num_targets)
        self.num_channels = int(num_channels)
        # self.ts = torch.tensor([0, 1]).view(1, 2)
        self.ts = jnp.array([[0.0, 1.0]], dtype=jnp.float32)
        self._max_tile_lanes, self._vmem_limit = _tpu_budgets()
        # Deterministic synthetic teacher parameters (1x1 conv: [out_ch, in_ch]).
        # The /255 input normalization is folded into the weights; weights are
        # stored in bf16 for the MXU (0..255 integer inputs are exact in bf16).
        k1, k2 = jax.random.split(jax.random.PRNGKey(seed))
        w = 0.5 * jax.random.normal(
            k1, (self.num_targets, 2 * self.num_channels), jnp.float32)
        self.w1 = (w[:, :self.num_channels] / 255.0).astype(jnp.bfloat16)
        self.w2 = (w[:, self.num_channels:] / 255.0).astype(jnp.bfloat16)
        self.b = 0.1 * jax.random.normal(k2, (self.num_targets, 1), jnp.float32)

    # -- teacher stand-in (bf16 targets only; masks are dead work) -------------
    def _run_teacher(self, image_1, image_2):
        B, C, H, W = image_1.shape
        HW = H * W
        K = self.num_targets
        TILE, HW_pad = _plan_tiles(HW, self._max_tile_lanes)
        n_tiles = HW_pad // TILE

        def prep(img):
            x = img.reshape(B, C, HW)
            if x.dtype != jnp.uint8:          # uint8 images go straight through
                x = x.astype(jnp.bfloat16)    # halve input HBM traffic vs f32
            if HW_pad != HW:                  # only lane-alignment padding
                x = jnp.pad(x, ((0, 0), (0, 0), (0, HW_pad - HW)))
            return x

        im1, im2 = prep(image_1), prep(image_2)

        targets = pl.pallas_call(
            _teacher_kernel,
            out_shape=jax.ShapeDtypeStruct((B, K, HW_pad), jnp.bfloat16),
            grid_spec=pltpu.PrefetchScalarGridSpec(
                num_scalar_prefetch=0,
                grid=(B, n_tiles),
                in_specs=[
                    pl.BlockSpec((1, C, TILE), lambda b, t: (b, 0, t)),
                    pl.BlockSpec((1, C, TILE), lambda b, t: (b, 0, t)),
                    pl.BlockSpec((K, C), lambda b, t: (0, 0)),
                    pl.BlockSpec((K, C), lambda b, t: (0, 0)),
                    pl.BlockSpec((K, 1), lambda b, t: (0, 0)),
                ],
                out_specs=pl.BlockSpec((1, K, TILE), lambda b, t: (b, 0, t)),
            ),
            compiler_params=pltpu.CompilerParams(
                dimension_semantics=("parallel", "parallel"),
                vmem_limit_bytes=self._vmem_limit),
        )(im1, im2, self.w1, self.w2, self.b)
        return targets, HW_pad                                   # (B, K, HW_pad)

    # -- gt_segment branch: IoU reductions + argmax select ---------------------
    def _select_gt_segment(self, targets_flat, gt_segment, H, W):
        HW = H * W
        _, K, HW_pad = targets_flat.shape
        # NOTE: jnp.unique is data-dependent-shaped -> eager only (like torch).
        uniq = jnp.unique(gt_segment)                            # (NSEG,)
        gt_bool = (uniq.reshape(1, -1, 1, 1) == gt_segment)      # (1, NSEG, H, W)
        NSEG = gt_bool.shape[1]
        # Exact torch broadcasting of (1,K,H,W) with (1,NSEG,H,W):
        Kb = jnp.broadcast_shapes((K,), (NSEG,))[0]

        g = gt_bool.reshape(1, NSEG, HW).astype(jnp.int8)        # 1 B/elt gt stream
        if HW_pad != HW:                                         # lane alignment only
            g = jnp.pad(g, ((0, 0), (0, 0), (0, HW_pad - HW)))

        # Cap the IoU tile so the bf16+int8 per-step footprint stays modest.
        iou_cap = min(self._max_tile_lanes,
                      max(128, ((8 * 1024 * 1024) // (3 * Kb)) // 128 * 128))
        TILE, _ = _plan_tiles(HW, iou_cap)
        n_tiles = HW_pad // TILE
        # Leading "parallel" split so both v7x TensorCores share the reduction
        # (neutral on v5e/v6e); partials are summed on the host.
        nsplit = 2 if (n_tiles % 2 == 0 and n_tiles >= 4) else 1
        inner = n_tiles // nsplit

        inter_p, union_p = pl.pallas_call(
            functools.partial(_iou_sums_kernel, hw=HW, tiles_per_split=inner),
            out_shape=(jax.ShapeDtypeStruct((nsplit, Kb, 128), jnp.float32),
                       jax.ShapeDtypeStruct((nsplit, Kb, 128), jnp.float32)),
            grid_spec=pltpu.PrefetchScalarGridSpec(
                num_scalar_prefetch=0,
                grid=(nsplit, inner),
                in_specs=[
                    pl.BlockSpec((1, K, TILE),
                                 lambda c, i: (0, 0, c * inner + i)),
                    pl.BlockSpec((1, NSEG, TILE),
                                 lambda c, i: (0, 0, c * inner + i)),
                ],
                out_specs=[pl.BlockSpec((1, Kb, 128), lambda c, i: (c, 0, 0)),
                           pl.BlockSpec((1, Kb, 128), lambda c, i: (c, 0, 0))],
                scratch_shapes=[pltpu.VMEM((Kb, 128), jnp.float32),
                                pltpu.VMEM((Kb, 128), jnp.float32)]),
            compiler_params=pltpu.CompilerParams(
                dimension_semantics=("parallel", "arbitrary"),
                vmem_limit_bytes=self._vmem_limit),
        )(targets_flat, g)

        intersection = inter_p.sum(axis=(0, 2)).reshape(1, Kb)   # (1, Kb)
        union = union_p.sum(axis=(0, 2)).reshape(1, Kb)          # (1, Kb)
        iou = intersection / (union + 1e-12)
        idx = jnp.argmax(iou, axis=1)                            # (1,)
        return gt_bool[:, idx]                                   # (1, 1, H, W) bool

    # -- forward ---------------------------------------------------------------
    def forward(self, image_1, image_2, ts=None, gt_segment=None):
        B, _, H, W = image_1.shape
        HW = H * W
        K = self.num_targets
        ts = (jnp.broadcast_to(self.ts, (B, 2)).astype(jnp.float32)
              if ts is None else ts)
        del ts  # consumed only by the (untranslatable) pretrained teacher

        # x = cat(image_1, image_2)/255 is folded into the teacher kernel.
        targets_flat, HW_pad = self._run_teacher(image_1, image_2)
        sampling_distribution = None   # TODO(synk): teacher-internal attribute
        target_points = None           # only set for 'bbnet_float'/'bbnet_binary'

        if gt_segment is not None:
            assert B == 1
            # (1, 1, H, W) bool — exactly like the reference's gt_segment[:, idx]
            targets = self._select_gt_segment(targets_flat, gt_segment, H, W)
        else:
            targets = targets_flat[:, :, :HW].reshape(B, K, H, W)   # bf16

        # ptargets / ntargets (targets >/< thresholds) are computed but never
        # used in the reference forward — dead work, intentionally skipped.
        return (target_points, jax.lax.stop_gradient(targets),
                sampling_distribution)


# -----------------------------------------------------------------------------
if __name__ == "__main__":
    key = jax.random.PRNGKey(0)
    C, H, W = 3, 16, 16
    k1, k2, k3, k4 = jax.random.split(key, 4)

    net = EvalBBNetPallas(pos_threshold=0.9, neg_threshold=0.1,
                          num_targets=8, num_channels=C)

    # Path with gt_segment (exercises the tiled IoU reduction kernel), B=1.
    image_1 = jax.random.uniform(k1, (1, C, H, W), jnp.float32, 0.0, 255.0)
    image_2 = jax.random.uniform(k2, (1, C, H, W), jnp.float32, 0.0, 255.0)
    rows = jnp.arange(H)[:, None] // 4
    cols = jnp.arange(W)[None, :] // 8
    gt_segment = (rows * 2 + cols).astype(jnp.int32)[None]      # (1, H, W), 8 labels
    tp, targets_sel, sd = net.forward(image_1, image_2, gt_segment=gt_segment)
    jax.block_until_ready(targets_sel)
    assert targets_sel.shape == (1, 1, H, W)

    # Path without gt_segment (raw teacher targets), batched B=2.
    image_1b = jax.random.uniform(k3, (2, C, H, W), jnp.float32, 0.0, 255.0)
    image_2b = jax.random.uniform(k4, (2, C, H, W), jnp.float32, 0.0, 255.0)
    tp2, targets_raw, sd2 = net.forward(image_1b, image_2b)
    jax.block_until_ready(targets_raw)
    assert targets_raw.shape == (2, 8, H, W)

    print("KERNEL_OK")
</pallas_src>

<mosaic_0001>
module attributes {stable_mosaic.version = 11 : i64} {
  func.func @_teacher_kernel(%arg0: i32, %arg1: i32, %arg2: memref<1x3x256xbf16, #tpu.memory_space<vmem>>, %arg3: memref<1x3x256xbf16, #tpu.memory_space<vmem>>, %arg4: memref<8x3xbf16, #tpu.memory_space<vmem>>, %arg5: memref<8x3xbf16, #tpu.memory_space<vmem>>, %arg6: memref<8x1xf32, #tpu.memory_space<vmem>>, %arg7: memref<1x8x256xbf16, #tpu.memory_space<vmem>>) attributes {dimension_semantics = [#tpu.dimension_semantics<parallel>, #tpu.dimension_semantics<parallel>], iteration_bounds = array<i64: 1, 1>, scalar_prefetch = 0 : i64, scratch_operands = 0 : i64, tpu.core_type = #tpu.core_type<tc>, window_params = [{transform_indices = @transform_0, window_bounds = array<i64: 1, 3, 256>}, {transform_indices = @transform_1, window_bounds = array<i64: 1, 3, 256>}, {pipeline_mode = #tpu.pipeline_mode<synchronous>, transform_indices = @transform_2, window_bounds = array<i64: 8, 3>}, {pipeline_mode = #tpu.pipeline_mode<synchronous>, transform_indices = @transform_3, window_bounds = array<i64: 8, 3>}, {pipeline_mode = #tpu.pipeline_mode<synchronous>, transform_indices = @transform_4, window_bounds = array<i64: 8, 1>}, {transform_indices = @transform_5, window_bounds = array<i64: 1, 8, 256>}]} {
    %c0 = arith.constant 0 : index
    %c0_0 = arith.constant 0 : index
    %c0_1 = arith.constant 0 : index
    %0 = vector.load %arg2[%c0, %c0_0, %c0_1] : memref<1x3x256xbf16, #tpu.memory_space<vmem>>, vector<1x3x256xbf16>
    %1 = vector.shape_cast %0 : vector<1x3x256xbf16> to vector<3x256xbf16>
    %c0_2 = arith.constant 0 : index
    %c0_3 = arith.constant 0 : index
    %c0_4 = arith.constant 0 : index
    %2 = vector.load %arg3[%c0_2, %c0_3, %c0_4] : memref<1x3x256xbf16, #tpu.memory_space<vmem>>, vector<1x3x256xbf16>
    %3 = vector.shape_cast %2 : vector<1x3x256xbf16> to vector<3x256xbf16>
    %c0_5 = arith.constant 0 : index
    %c0_6 = arith.constant 0 : index
    %4 = vector.load %arg4[%c0_5, %c0_6] : memref<8x3xbf16, #tpu.memory_space<vmem>>, vector<8x3xbf16>
    %cst = arith.constant dense<0.000000e+00> : vector<8x256xf32>
    %5 = tpu.matmul %4, %1, %cst {dimension_numbers = #tpu.dot_dimension_numbers<[1], [0], [0], [1], [0, 0, 1, 1], [], []>} : vector<8x3xbf16>, vector<3x256xbf16>, vector<8x256xf32> -> vector<8x256xf32>
    %c0_7 = arith.constant 0 : index
    %c0_8 = arith.constant 0 : index
    %6 = vector.load %arg5[%c0_7, %c0_8] : memref<8x3xbf16, #tpu.memory_space<vmem>>, vector<8x3xbf16>
    %cst_9 = arith.constant dense<0.000000e+00> : vector<8x256xf32>
    %7 = tpu.matmul %6, %3, %cst_9 {dimension_numbers = #tpu.dot_dimension_numbers<[1], [0], [0], [1], [0, 0, 1, 1], [], []>} : vector<8x3xbf16>, vector<3x256xbf16>, vector<8x256xf32> -> vector<8x256xf32>
    %8 = arith.addf %5, %7 : vector<8x256xf32>
    %c0_10 = arith.constant 0 : index
    %c0_11 = arith.constant 0 : index
    %9 = vector.load %arg6[%c0_10, %c0_11] : memref<8x1xf32, #tpu.memory_space<vmem>>, vector<8x1xf32>
    %10 = vector.broadcast %9 : vector<8x1xf32> to vector<8x256xf32>
    %11 = arith.addf %8, %10 : vector<8x256xf32>
    %12 = arith.negf %11 : vector<8x256xf32>
    %13 = math.exp %12 : vector<8x256xf32>
    %cst_12 = arith.constant 1.000000e+00 : f32
    %14 = vector.broadcast %cst_12 : f32 to vector<8x256xf32>
    %15 = arith.addf %14, %13 : vector<8x256xf32>
    %16 = arith.divf %14, %15 : vector<8x256xf32>
    %17 = arith.truncf %16 : vector<8x256xf32> to vector<8x256xbf16>
    %18 = vector.shape_cast %17 : vector<8x256xbf16> to vector<1x8x256xbf16>
    %c0_13 = arith.constant 0 : index
    %c0_14 = arith.constant 0 : index
    %c0_15 = arith.constant 0 : index
    %19 = vector.load %arg7[%c0_13, %c0_14, %c0_15] : memref<1x8x256xbf16, #tpu.memory_space<vmem>>, vector<1x8x256xbf16>
    tpu.vector_store %arg7[%c0_13, %c0_14, %c0_15], %18 {strides = array<i32>} : memref<1x8x256xbf16, #tpu.memory_space<vmem>>, vector<1x8x256xbf16>,
    return
  }
  func.func @transform_0(%arg0: i32, %arg1: i32) -> (i32, i32, i32) {
    %c0_i32 = arith.constant 0 : i32
    %c0_i32_0 = arith.constant 0 : i32
    return %arg0, %c0_i32, %arg1 : i32, i32, i32
  }
  func.func @transform_1(%arg0: i32, %arg1: i32) -> (i32, i32, i32) {
    %c0_i32 = arith.constant 0 : i32
    %c0_i32_0 = arith.constant 0 : i32
    return %arg0, %c0_i32, %arg1 : i32, i32, i32
  }
  func.func @transform_2(%arg0: i32, %arg1: i32) -> (i32, i32) {
    %c0_i32 = arith.constant 0 : i32
    %c0_i32_0 = arith.constant 0 : i32
    %c0_i32_1 = arith.constant 0 : i32
    return %c0_i32, %c0_i32_0 : i32, i32
  }
  func.func @transform_3(%arg0: i32, %arg1: i32) -> (i32, i32) {
    %c0_i32 = arith.constant 0 : i32
    %c0_i32_0 = arith.constant 0 : i32
    %c0_i32_1 = arith.constant 0 : i32
    return %c0_i32, %c0_i32_0 : i32, i32
  }
  func.func @transform_4(%arg0: i32, %arg1: i32) -> (i32, i32) {
    %c0_i32 = arith.constant 0 : i32
    %c0_i32_0 = arith.constant 0 : i32
    %c0_i32_1 = arith.constant 0 : i32
    return %c0_i32, %c0_i32_0 : i32, i32
  }
  func.func @transform_5(%arg0: i32, %arg1: i32) -> (i32, i32, i32) {
    %c0_i32 = arith.constant 0 : i32
    %c0_i32_0 = arith.constant 0 : i32
    return %arg0, %c0_i32, %arg1 : i32, i32, i32
  }
}

</mosaic_0001>

<llo_original>
// kernel: tpu_custom_call.1
$region0: #{tpu_custom_call.1}
  #allocation0 [shape = 'u32[]', space=smem, size = 0x4, offset = 0x4, fixed_abs, tag = 'smem constant byte address 0x4 - core index']
  #allocation1 [shape = 'u32[144,128]{1,0:T(1,128)}', space=vmem, size = 0x12000, scoped, tag = 'internal scratch']
  %s0 = inlined_call_operand.vmem [shape: bf16[1,3,256], index: 0, kind: input, shape index: {}]
  %s1 = inlined_call_operand.vmem [shape: bf16[1,3,256], index: 1, kind: input, shape index: {}]
  %s2 = inlined_call_operand.vmem [shape: bf16[8,3], index: 2, kind: input, shape index: {}]
  %s3 = inlined_call_operand.vmem [shape: bf16[8,3], index: 3, kind: input, shape index: {}]
  %s4 = inlined_call_operand.vmem [shape: f32[8,1], index: 4, kind: input, shape index: {}]
  %s5 = inlined_call_operand.hbm [shape: bf16[1,8,256], index: 5, kind: output, shape index: {}]
  %s6 = sld [smem:[#allocation0]]
  $region30: #{tpu_custom_call.1} parent=0
    _
  %s8 = ssub.s32 1, %s6
  %s9 = scalar_select 0, %s8, %s6
  $region1: #{tpu_custom_call.1} parent=0
    #allocation2 [shape = 'u8[4096]{0}', space=vmem, size = 0x1000, scoped, tag = 'output window, operand 0, single buffered']
    #allocation3 [shape = 's32[1]{0}', space=sflag, size = 0x4, scoped, tag = 'scoped memory for tpu_custom_call.1']
    %10 = vsyncpa [#allocation3], 0
    // Predicated region
    $region2: #{tpu_custom_call.1} parent=1 // pred_check
      _
    $region3: #{tpu_custom_call.1} parent=1 // pred_check_branch
      %12 = sbr.rel (0) target = $region5
    $region4: #{tpu_custom_call.1} parent=1 // pred_region
      _
    $region5: #{tpu_custom_call.1} parent=1 // pred_fallthru
      _
    // Predicated region
    $region6: #{tpu_custom_call.1} parent=1 // pred_check
      _
    $region7: #{tpu_custom_call.1} parent=1 // pred_check_branch
      %14 = sbr.rel (0) target = $region9
    $region8: #{tpu_custom_call.1} parent=1 // pred_region
      _
    $region9: #{tpu_custom_call.1} parent=1 // pred_fallthru
      _
    // Predicated region
    $region10: #{tpu_custom_call.1} parent=1 // pred_check
      _
    $region11: #{tpu_custom_call.1} parent=1 // pred_check_branch
      %16 = sbr.rel (0) target = $region13
    $region12: #{tpu_custom_call.1} parent=1 // pred_region
      _
    $region13: #{tpu_custom_call.1} parent=1 // pred_fallthru
      _
    // Predicated region
    $region14: #{tpu_custom_call.1} parent=1 // pred_check
      _
    $region15: #{tpu_custom_call.1} parent=1 // pred_check_branch
      %18 = sbr.rel (0) target = $region17
    $region16: #{tpu_custom_call.1} parent=1 // pred_region
      _
    $region17: #{tpu_custom_call.1} parent=1 // pred_fallthru
      _
    // Predicated region
    $region18: #{tpu_custom_call.1} parent=1 // pred_check
      _
    $region19: #{tpu_custom_call.1} parent=1 // pred_check_branch
      %20 = sbr.rel (0) target = $region21
    $region20: #{tpu_custom_call.1} parent=1 // pred_region
      _
    $region21: #{tpu_custom_call.1} parent=1 // pred_fallthru
      _
    %v22 = vld [vmem:[%s0] sm:$0xf]
    %v23 = vld [vmem:[%s1] sm:$0xf]
    %v24 = vld [vmem:[%s2] sm:$0xf]
    %v25 = vld [vmem:[%s3] sm:$0xf]
    %v28 = vunpack.c.l.s4 1983009808
    %v29 = vunpack.c.0.s8 %v28
    %v30 = vlaneseq
    %v31 = vshrl.u32 %v30, 7
    %v32 = vsub.s32 %v29, %v31
    %v33 = vrot.slane %v23, %v32
    %v34 = vcombine.high %v33, %v33
    %vm35 = vcmask 23552
    %v37 = vsel %vm35, %v25, 0
    %vm39 = vcmask 1040384
    %vm40 = vcmask 1041408
    %v41 = vsel %vm39, 4294967295, 65535
    %v42 = vsel %vm40, %v41, 0
    %v44 = vand.u32 %v33, %v42
    %v47 = vand.u32 %v34, %v42
    %49 = vmatprep.subr.bf16.mxu0 0
    %50 = vmatpush1.bf16.msra.mxu0 0
    %51 = vmatprep.subr.bf16.mxu0 0
    %52 = vmatpush1.bf16.msra.mxu0 0
    %53 = vmatprep.subr.bf16.mxu0 0
    %54 = vmatpush1.bf16.msra.mxu0 0
    %55 = vmatprep.subr.bf16.mxu0 0
    %56 = vmatpush1.bf16.msra.mxu0 0
    %57 = vmatprep.subr.bf16.mxu0 0
    %58 = vmatpush1.bf16.msra.mxu0 0
    %59 = vmatprep.subr.bf16.mxu0 0
    %60 = vmatpush1.bf16.msra.mxu0 0
    %61 = vmatprep.subr.bf16.mxu0 0
    %62 = vmatpush1.bf16.msra.mxu0 0
    %63 = vmatprep.subr.bf16.mxu0 %v47
    %64 = vmatpush1.bf16.msra.mxu0 %v44
    %65 = vmatprep.subr.bf16.mxu0 0
    %66 = vmatpush2.bf16.msra.mxu0 0
    %67 = vmatprep.subr.bf16.mxu0 0
    %68 = vmatpush2.bf16.msra.mxu0 0
    %69 = vmatprep.subr.bf16.mxu0 0
    %70 = vmatpush2.bf16.msra.mxu0 0
    %71 = vmatprep.subr.bf16.mxu0 0
    %72 = vmatpush2.bf16.msra.mxu0 0
    %73 = vmatprep.subr.bf16.mxu0 0
    %74 = vmatpush2.bf16.msra.mxu0 0
    %75 = vmatprep.subr.bf16.mxu0 0
    %76 = vmatpush2.bf16.msra.mxu0 0
    %77 = vmatprep.subr.bf16.mxu0 0
    %78 = vmatpush2.bf16.msra.mxu0 0
    %79 = vmatprep.subr.bf16.mxu0 0
    %80 = vmatpush2.bf16.msra.mxu0 0
    %81 = vmatprep.mubr.bf16.mxu0 0
    %82 = vmatmul.mubr.bf16.gmra.mxu0 %v37
    %v83 = vpop.f32.mrf.mxu0
    %v84 = vadd.f32 0.0, %v83
    %v85 = vpop.f32.mrf.mxu0
    %v86 = vadd.f32 0.0, %v85
    %v87 = vpop.f32.mrf.mxu0
    %v88 = vpop.f32.mrf.mxu0
    %89 = vdwg.mxu0
    %v92 = vunpack.c.l.s4 1983009808
    %v93 = vunpack.c.0.s8 %v92
    %v94 = vlaneseq
    %v95 = vshrl.u32 %v94, 7
    %v96 = vsub.s32 %v93, %v95
    %v97 = vrot.slane %v22, %v96
    %v98 = vcombine.high %v97, %v97
    %v100 = vsel %vm35, %v24, 0
    %v103 = vand.u32 %v97, %v42
    %v106 = vand.u32 %v98, %v42
    %108 = vmatprep.subr.bf16.mxu0 0
    %109 = vmatpush1.bf16.msra.mxu0 0
    %110 = vmatprep.subr.bf16.mxu0 0
    %111 = vmatpush1.bf16.msra.mxu0 0
    %112 = vmatprep.subr.bf16.mxu0 0
    %113 = vmatpush1.bf16.msra.mxu0 0
    %114 = vmatprep.subr.bf16.mxu0 0
    %115 = vmatpush1.bf16.msra.mxu0 0
    %116 = vmatprep.subr.bf16.mxu0 0
    %117 = vmatpush1.bf16.msra.mxu0 0
    %118 = vmatprep.subr.bf16.mxu0 0
    %119 = vmatpush1.bf16.msra.mxu0 0
    %120 = vmatprep.subr.bf16.mxu0 0
    %121 = vmatpush1.bf16.msra.mxu0 0
    %122 = vmatprep.subr.bf16.mxu0 %v106
    %123 = vmatpush1.bf16.msra.mxu0 %v103
    %124 = vmatprep.subr.bf16.mxu0 0
    %125 = vmatpush2.bf16.msra.mxu0 0
    %126 = vmatprep.subr.bf16.mxu0 0
    %127 = vmatpush2.bf16.msra.mxu0 0
    %128 = vmatprep.subr.bf16.mxu0 0
    %129 = vmatpush2.bf16.msra.mxu0 0
    %130 = vmatprep.subr.bf16.mxu0 0
    %131 = vmatpush2.bf16.msra.mxu0 0
    %132 = vmatprep.subr.bf16.mxu0 0
    %133 = vmatpush2.bf16.msra.mxu0 0
    %134 = vmatprep.subr.bf16.mxu0 0
    %135 = vmatpush2.bf16.msra.mxu0 0
    %136 = vmatprep.subr.bf16.mxu0 0
    %137 = vmatpush2.bf16.msra.mxu0 0
    %138 = vmatprep.subr.bf16.mxu0 0
    %139 = vmatpush2.bf16.msra.mxu0 0
    %140 = vmatprep.mubr.bf16.mxu0 0
    %141 = vmatmul.mubr.bf16.gmra.mxu0 %v100
    %v142 = vpop.f32.mrf.mxu0
    %v143 = vadd.f32 %v84, %v142
    %v144 = vpop.f32.mrf.mxu0
    %v145 = vadd.f32 %v86, %v144
    %v146 = vpop.f32.mrf.mxu0
    %v147 = vpop.f32.mrf.mxu0
    %148 = vdwg.mxu0
    %v149 = vld [vmem:[%s4] sm:$0xff]
    %151 = vset.pattern.permute.xlu0 0
    %152 = vperm.xlu0 %151, %v149
    %v153 = vpop.permute.xlu0 %152
    %v155 = vadd.f32 %v143, %v153
    %v156 = vadd.f32 %v145, %v153
    %v157 = vxor.u32 %v155, 2147483648
    %v158 = vxor.u32 %v156, 2147483648
    %v159 = vmul.f32 %v157, 1.442695
    %v160 = vpow.pop %v159
    %v161 = vmul.f32 %v158, 1.442695
    %v162 = vpow.pop %v161
    %v163 = vadd.f32 %v160, 1.0
    %v164 = vadd.f32 %v162, 1.0
    %v165 = vrcp.pop %v163
    %v166 = vmul.f32 1.0, %v165
    %v167 = vrcp.pop %v164
    %v168 = vmul.f32 1.0, %v167
    %v169 = vpack.c.bf16 %v166, %v166
    %v170 = vpack.c.bf16 %v168, %v168
    %v173 = vunpack.c.l.b16 %v169
    %v174 = vunpack.c.l.b16 %v170
    %v175 = vpack.c.b16 %v174, %v173
    %177 = vst [vmem:[#allocation2] sm:$0xff] %v175
    // Predicated region
    $region22: #{tpu_custom_call.1} parent=1 // pred_check
      _
    $region23: #{tpu_custom_call.1} parent=1 // pred_check_branch
      %179 = sbr.rel (0) target = $region25
    $region24: #{tpu_custom_call.1} parent=1 // pred_region
      %s181 = ssub.s32 128, 128
      %182 = vsyncadd [#allocation3], %s181
      %s184 = sshll.u32 [#allocation2], 4
      %s185 = int_to_ptr.vmem [resolvable:$true] %s184
      %187 = dma.vmem_to_hbm [thread:$0]  %s185, 128, %s5, [#allocation3]
    $region25: #{tpu_custom_call.1} parent=1 // pred_fallthru
      _
    // Predicated region
    $region26: #{tpu_custom_call.1} parent=1 // pred_check
      _
    $region27: #{tpu_custom_call.1} parent=1 // pred_check_branch
      %189 = sbr.rel (0) target = $region29
    $region28: #{tpu_custom_call.1} parent=1 // pred_region
      %190 = dma.done [#allocation3], 128
    $region29: #{tpu_custom_call.1} parent=1 // pred_fallthru
      _
    %191 = vsyncpa [#allocation3], 1

</llo_original>
